<compile_context>
chip_gen: v7x
topology: tpu7x:2x2x1
jax: 0.10.0
libtpu: 0.0.40
codegen_flags: <defaults>
</compile_context>

<pallas_src>
import functools

import jax
import jax.numpy as jnp
from jax.experimental import pallas as pl
from jax.experimental.pallas import tpu as pltpu


def _layernorm_kernel(x_ref, g_ref, b_ref, o_ref, *, d_model, eps):
    # x_ref: (tile_rows, d_model); g_ref / b_ref: (1, d_model)
    x = x_ref[...].astype(jnp.float32)
    mean = jnp.mean(x, axis=-1, keepdims=True)
    diff = x - mean
    # NOTE: intentionally the *unbiased* estimator (N-1) with eps added to std,
    # matching torch.Tensor.std() + this module.  Do not "fix" to nn.LayerNorm.
    var = jnp.sum(diff * diff, axis=-1, keepdims=True) * (1.0 / (d_model - 1))
    std = jnp.sqrt(var)
    # Exact reciprocal: only tile_rows divides per block, negligible in a
    # bandwidth-bound kernel, and approx=True measured ~1e-2 abs error.
    inv = 1.0 / (std + eps)                                   # (tile_rows, 1)
    y = diff * inv
    y = y * g_ref[...].astype(jnp.float32) + b_ref[...].astype(jnp.float32)
    # Ragged last tile: padded garbage rows are computed then masked on store.
    # Safe because rows are independent and the reduction axis (d_model) is
    # always the full block -- keep it that way if editing this kernel.
    o_ref[...] = y.astype(o_ref.dtype)


def _vmem_capacity_bytes():
    try:
        return int(pltpu.get_tpu_info().vmem_capacity_bytes)
    except Exception:
        return 64 * 1024 * 1024  # conservative fallback (v7x per-core VMEM)


def _sublane_multiple(dtype):
    """Dtype-packing sublane multiple: 8 for 32-bit, 16 for bf16, 32 for 8-bit."""
    itemsize = jnp.dtype(dtype).itemsize
    if itemsize >= 4:
        return 8
    if itemsize == 2:
        return 16
    return 32


def _pick_tile_rows(rows, d_model, dtype, phys_vmem):
    """Bytes-based row-tile sizing.

    Target a multi-MiB input block (measured streaming kernels reach 85%+ of
    HBM roofline only once blocks are ~a few MiB), capped so the in-kernel f32
    temporaries plus double-buffered I/O fit a conservative VMEM budget, and
    capped at rows//2 so the grid never collapses to a single step (which
    would idle one of v7x's two TensorCores).
    """
    sub = _sublane_multiple(dtype)
    itemsize = max(jnp.dtype(dtype).itemsize, 1)

    # ~4 MiB blocks on 128 MiB-VMEM chips (v5e/v6e), ~2 MiB on v7x's 64 MiB.
    target_block_bytes = (4 if phys_vmem >= 96 * 1024 * 1024 else 2) * 1024 * 1024
    tile = target_block_bytes // max(d_model * itemsize, 1)

    # VMEM budget check: ~5 tile-sized f32-equivalent buffers (double-buffered
    # input + output tiles plus in-kernel f32 temporaries).
    budget = min(phys_vmem // 4, 32 * 1024 * 1024)
    cap_by_vmem = budget // max(d_model * 4 * 5, 1)
    tile = min(tile, cap_by_vmem)

    # Keep at least 2 grid steps for non-trivial inputs so the "parallel" row
    # axis has something to shard across 2 TensorCores on v7x.
    if rows > 2 * sub:
        tile = min(tile, rows // 2)

    tile = max(sub, (tile // sub) * sub)
    tile = min(tile, rows)

    # Prefer an even grid-step count (avoids a 1-step load imbalance when the
    # axis is split across two cores).
    grid = -(-rows // tile)
    if grid > 1 and grid % 2 == 1:
        new_tile = -(-rows // (grid + 1))
        new_tile = max(sub, ((new_tile + sub - 1) // sub) * sub)
        if sub <= new_tile <= tile:
            tile = new_tile

    return int(tile)


def layer_norm(x, gamma, beta, eps=1e-6, *, tile_rows=None):
    """x: (batch, seq, d_model); gamma/beta: (d_model,)."""
    batch, seq, d_model = x.shape
    assert d_model > 1, "unbiased std needs d_model > 1 (divides by d_model-1)"
    rows = batch * seq

    x2d = x.reshape(rows, d_model)
    g2d = gamma.reshape(1, d_model)
    b2d = beta.reshape(1, d_model)

    phys_vmem = _vmem_capacity_bytes()
    if tile_rows is None:
        tile_rows = _pick_tile_rows(rows, d_model, x.dtype, phys_vmem)
    tile_rows = min(tile_rows, rows)

    # Scoped VMEM request tracks the actual working set (~2x headroom), clipped
    # to 3/4 of physical VMEM.  Avoids reserving 48/96 MiB for a few-MiB kernel.
    bytes_io_tile = tile_rows * d_model * x.dtype.itemsize
    bytes_f32_tile = tile_rows * d_model * 4
    needed = 4 * bytes_io_tile + 3 * bytes_f32_tile + 4 * d_model * 4
    vmem_limit = int(min(max(2 * needed, 4 * 1024 * 1024), phys_vmem * 3 // 4))

    kernel = functools.partial(_layernorm_kernel, d_model=d_model, eps=eps)

    out2d = pl.pallas_call(
        kernel,
        out_shape=jax.ShapeDtypeStruct((rows, d_model), x.dtype),
        grid_spec=pltpu.PrefetchScalarGridSpec(
            num_scalar_prefetch=0,
            # Ragged last tile is fine: rows are independent and the reduction
            # axis (d_model) is always the full block; OOB rows are masked.
            grid=(pl.cdiv(rows, tile_rows),),
            in_specs=[
                pl.BlockSpec((tile_rows, d_model), lambda i: (i, 0)),
                pl.BlockSpec((1, d_model), lambda i: (0, 0)),
                pl.BlockSpec((1, d_model), lambda i: (0, 0)),
            ],
            out_specs=pl.BlockSpec((tile_rows, d_model), lambda i: (i, 0)),
        ),
        compiler_params=pltpu.CompilerParams(
            # "parallel" shards the row axis across the 2 TensorCores on v7x;
            # no-op on v5e/v6e.
            dimension_semantics=("parallel",),
            vmem_limit_bytes=vmem_limit,
        ),
    )(x2d, g2d, b2d)

    return out2d.reshape(batch, seq, d_model)


if __name__ == "__main__":
    # Small but lane-dense test shape: d_model = 128 keeps vregs and output
    # stores fully utilized (a <128 last dim wastes most of every vreg).
    batch, seq, d_model = 2, 8, 128
    eps = 1e-6

    key = jax.random.PRNGKey(0)
    kx, kg, kb = jax.random.split(key, 3)
    x = jax.random.normal(kx, (batch, seq, d_model), dtype=jnp.float32)
    # Init is ones/zeros in the module; perturb deterministically so the
    # affine path is actually exercised.
    gamma = 1.0 + 0.1 * jax.random.normal(kg, (d_model,), dtype=jnp.float32)
    beta = 0.1 * jax.random.normal(kb, (d_model,), dtype=jnp.float32)

    out = layer_norm(x, gamma, beta, eps)
    out = jax.block_until_ready(out)

    # Pure-JAX reference (PyTorch semantics: unbiased std, eps added to std).
    mean = jnp.mean(x, axis=-1, keepdims=True)
    std = jnp.sqrt(jnp.sum((x - mean) ** 2, axis=-1, keepdims=True) / (d_model - 1))
    ref = gamma * (x - mean) / (std + eps) + beta

    assert out.shape == (batch, seq, d_model)
    max_err = float(jnp.max(jnp.abs(out - ref)))
    assert max_err < 1e-4, f"mismatch vs reference, max abs err {max_err}"

    print("KERNEL_OK")
</pallas_src>

<mosaic_0001>
module attributes {stable_mosaic.version = 11 : i64} {
  func.func @_layernorm_kernel(%arg0: i32, %arg1: memref<16x128xf32, #tpu.memory_space<vmem>>, %arg2: memref<1x128xf32, #tpu.memory_space<vmem>>, %arg3: memref<1x128xf32, #tpu.memory_space<vmem>>, %arg4: memref<16x128xf32, #tpu.memory_space<vmem>>) attributes {dimension_semantics = [#tpu.dimension_semantics<parallel>], iteration_bounds = array<i64: 1>, scalar_prefetch = 0 : i64, scratch_operands = 0 : i64, tpu.core_type = #tpu.core_type<tc>, window_params = [{transform_indices = @transform_0, window_bounds = array<i64: 16, 128>}, {pipeline_mode = #tpu.pipeline_mode<synchronous>, transform_indices = @transform_1, window_bounds = array<i64: 1, 128>}, {pipeline_mode = #tpu.pipeline_mode<synchronous>, transform_indices = @transform_2, window_bounds = array<i64: 1, 128>}, {transform_indices = @transform_3, window_bounds = array<i64: 16, 128>}]} {
    %c0 = arith.constant 0 : index
    %c0_0 = arith.constant 0 : index
    %0 = vector.load %arg1[%c0, %c0_0] : memref<16x128xf32, #tpu.memory_space<vmem>>, vector<16x128xf32>
    %cst = arith.constant dense<0.000000e+00> : vector<16xf32>
    %1 = vector.multi_reduction <add>, %0, %cst [1] : vector<16x128xf32> to vector<16xf32>
    %2 = vector.shape_cast %1 : vector<16xf32> to vector<16x1xf32>
    %cst_1 = arith.constant 1.280000e+02 : f32
    %3 = vector.broadcast %cst_1 : f32 to vector<16x1xf32>
    %4 = arith.divf %2, %3 : vector<16x1xf32>
    %5 = vector.broadcast %4 : vector<16x1xf32> to vector<16x128xf32>
    %6 = arith.subf %0, %5 : vector<16x128xf32>
    %7 = arith.mulf %6, %6 : vector<16x128xf32>
    %cst_2 = arith.constant dense<0.000000e+00> : vector<16xf32>
    %8 = vector.multi_reduction <add>, %7, %cst_2 [1] : vector<16x128xf32> to vector<16xf32>
    %9 = vector.shape_cast %8 : vector<16xf32> to vector<16x1xf32>
    %cst_3 = arith.constant 0.00787401571 : f32
    %10 = vector.broadcast %cst_3 : f32 to vector<16x1xf32>
    %11 = arith.mulf %9, %10 : vector<16x1xf32>
    %12 = math.sqrt %11 : vector<16x1xf32>
    %cst_4 = arith.constant 9.99999997E-7 : f32
    %13 = vector.broadcast %cst_4 : f32 to vector<16x1xf32>
    %14 = arith.addf %12, %13 : vector<16x1xf32>
    %cst_5 = arith.constant 1.000000e+00 : f32
    %15 = vector.broadcast %cst_5 : f32 to vector<16x1xf32>
    %16 = arith.divf %15, %14 : vector<16x1xf32>
    %17 = vector.broadcast %16 : vector<16x1xf32> to vector<16x128xf32>
    %18 = arith.mulf %6, %17 : vector<16x128xf32>
    %c0_6 = arith.constant 0 : index
    %c0_7 = arith.constant 0 : index
    %19 = vector.load %arg2[%c0_6, %c0_7] : memref<1x128xf32, #tpu.memory_space<vmem>>, vector<1x128xf32>
    %20 = vector.broadcast %19 : vector<1x128xf32> to vector<16x128xf32>
    %21 = arith.mulf %18, %20 : vector<16x128xf32>
    %c0_8 = arith.constant 0 : index
    %c0_9 = arith.constant 0 : index
    %22 = vector.load %arg3[%c0_8, %c0_9] : memref<1x128xf32, #tpu.memory_space<vmem>>, vector<1x128xf32>
    %23 = vector.broadcast %22 : vector<1x128xf32> to vector<16x128xf32>
    %24 = arith.addf %21, %23 : vector<16x128xf32>
    %c0_10 = arith.constant 0 : index
    %c0_11 = arith.constant 0 : index
    %25 = vector.load %arg4[%c0_10, %c0_11] : memref<16x128xf32, #tpu.memory_space<vmem>>, vector<16x128xf32>
    tpu.vector_store %arg4[%c0_10, %c0_11], %24 {strides = array<i32>} : memref<16x128xf32, #tpu.memory_space<vmem>>, vector<16x128xf32>,
    return
  }
  func.func @transform_0(%arg0: i32) -> (i32, i32) {
    %c0_i32 = arith.constant 0 : i32
    %c0_i32_0 = arith.constant 0 : i32
    return %arg0, %c0_i32 : i32, i32
  }
  func.func @transform_1(%arg0: i32) -> (i32, i32) {
    %c0_i32 = arith.constant 0 : i32
    %c0_i32_0 = arith.constant 0 : i32
    %c0_i32_1 = arith.constant 0 : i32
    return %c0_i32, %c0_i32_0 : i32, i32
  }
  func.func @transform_2(%arg0: i32) -> (i32, i32) {
    %c0_i32 = arith.constant 0 : i32
    %c0_i32_0 = arith.constant 0 : i32
    %c0_i32_1 = arith.constant 0 : i32
    return %c0_i32, %c0_i32_0 : i32, i32
  }
  func.func @transform_3(%arg0: i32) -> (i32, i32) {
    %c0_i32 = arith.constant 0 : i32
    %c0_i32_0 = arith.constant 0 : i32
    return %arg0, %c0_i32 : i32, i32
  }
}

</mosaic_0001>

<llo_original>
// kernel: tpu_custom_call.1
$region0: #{tpu_custom_call.1}
  #allocation0 [shape = 'u32[]', space=smem, size = 0x4, offset = 0x4, fixed_abs, tag = 'smem constant byte address 0x4 - core index']
  #allocation1 [shape = 'u32[144,128]{1,0:T(1,128)}', space=vmem, size = 0x12000, scoped, tag = 'internal scratch']
  %s0 = inlined_call_operand.hbm [shape: f32[16,128], index: 0, kind: input, shape index: {}]
  %s1 = inlined_call_operand.vmem [shape: f32[1,128], index: 1, kind: input, shape index: {}]
  %s2 = inlined_call_operand.vmem [shape: f32[1,128], index: 2, kind: input, shape index: {}]
  %s3 = inlined_call_operand.hbm [shape: f32[16,128], index: 3, kind: output, shape index: {}]
  %s4 = sld [smem:[#allocation0]]
  $region26: #{tpu_custom_call.1} parent=0
    _
  %s6 = ssub.s32 1, %s4
  %s7 = scalar_select 0, %s6, %s4
  $region1: #{tpu_custom_call.1} parent=0
    #allocation2 [shape = 'u8[8192]{0}', space=vmem, size = 0x2000, scoped, tag = 'input window, operand 0, single buffered']
    #allocation3 [shape = 's32[1]{0}', space=sflag, size = 0x4, scoped, tag = 'scoped memory for tpu_custom_call.1']
    #allocation4 [shape = 's32[1]{0}', space=sflag, size = 0x4, scoped, tag = 'scoped memory for tpu_custom_call.1']
    #allocation5 [shape = 'u8[8192]{0}', space=vmem, size = 0x2000, scoped, tag = 'output window, operand 0, single buffered']
    %8 = vsyncpa [#allocation3], 0
    %9 = vsyncpa [#allocation4], 0
    // Predicated region
    $region2: #{tpu_custom_call.1} parent=1 // pred_check
      _
    $region3: #{tpu_custom_call.1} parent=1 // pred_check_branch
      %11 = sbr.rel (0) target = $region5
    $region4: #{tpu_custom_call.1} parent=1 // pred_region
      %s13 = ssub.s32 256, 256
      %14 = vsyncadd [#allocation3], %s13
      %s15 = sshll.u32 [#allocation2], 4
      %s16 = int_to_ptr.vmem [resolvable:$true] %s15
      %21 = dma.hbm_to_vmem [thread:$0]  %s0, 256, %s16, [#allocation3], 128, 128, 8
    $region5: #{tpu_custom_call.1} parent=1 // pred_fallthru
      _
    // Predicated region
    $region6: #{tpu_custom_call.1} parent=1 // pred_check
      _
    $region7: #{tpu_custom_call.1} parent=1 // pred_check_branch
      %23 = sbr.rel (0) target = $region9
    $region8: #{tpu_custom_call.1} parent=1 // pred_region
      _
    $region9: #{tpu_custom_call.1} parent=1 // pred_fallthru
      _
    // Predicated region
    $region10: #{tpu_custom_call.1} parent=1 // pred_check
      _
    $region11: #{tpu_custom_call.1} parent=1 // pred_check_branch
      %25 = sbr.rel (0) target = $region13
    $region12: #{tpu_custom_call.1} parent=1 // pred_region
      _
    $region13: #{tpu_custom_call.1} parent=1 // pred_fallthru
      _
    // Predicated region
    $region14: #{tpu_custom_call.1} parent=1 // pred_check
      _
    $region15: #{tpu_custom_call.1} parent=1 // pred_check_branch
      %27 = sbr.rel (0) target = $region17
    $region16: #{tpu_custom_call.1} parent=1 // pred_region
      %28 = dma.done [#allocation3], 256
    $region17: #{tpu_custom_call.1} parent=1 // pred_fallthru
      _
    %v29 = vld [vmem:[#allocation2] sm:$0xff]
    %v30 = vld [vmem:[#allocation2 + $0x8] sm:$0xff]
    %31 = vadd.xlane.f32.xlu0 %v29
    %v32 = vpop.xlane.xlu0 %31
    %33 = vadd.xlane.f32.xlu0 %v30
    %v34 = vpop.xlane.xlu0 %33
    %v35 = vrcp.pop 128.0
    %v36 = vmul.f32 %v32, %v35
    %v37 = vmul.f32 %v34, %v35
    %v38 = vsub.f32 %v29, %v36
    %v39 = vsub.f32 %v30, %v37
    %v40 = vmul.f32 %v38, %v38
    %v41 = vmul.f32 %v39, %v39
    %42 = vadd.xlane.f32.xlu0 %v40
    %v43 = vpop.xlane.xlu0 %42
    %44 = vadd.xlane.f32.xlu0 %v41
    %v45 = vpop.xlane.xlu0 %44
    %v46 = vmul.f32 %v43, 0.007874016
    %v47 = vmul.f32 %v45, 0.007874016
    %v48 = vrsqrt.pop %v46
    %v49 = vmul.f32 %v46, %v48
    %vm50 = vcmp.eq.f32.partialorder %v46, inf
    %v51 = vsel %vm50, %v46, %v49
    %vm52 = vcmp.eq.f32.partialorder %v46, 0.0
    %v53 = vand.u32 %v46, 2147483648
    %v54 = vsel %vm52, %v53, %v51
    %v55 = vrsqrt.pop %v47
    %v56 = vmul.f32 %v47, %v55
    %vm57 = vcmp.eq.f32.partialorder %v47, inf
    %v58 = vsel %vm57, %v47, %v56
    %vm59 = vcmp.eq.f32.partialorder %v47, 0.0
    %v60 = vand.u32 %v47, 2147483648
    %v61 = vsel %vm59, %v60, %v58
    %v62 = vadd.f32 %v54, 1e-06
    %v63 = vadd.f32 %v61, 1e-06
    %v64 = vrcp.pop %v62
    %v65 = vmul.f32 1.0, %v64
    %v66 = vrcp.pop %v63
    %v67 = vmul.f32 1.0, %v66
    %v68 = vmul.f32 %v38, %v65
    %v69 = vmul.f32 %v39, %v67
    %v70 = vld [vmem:[%s1] sm:$0x1]
    %v72 = vlaneseq
    %v73 = vshrl.u32 %v72, 7
    %v74 = vsub.s32 0, %v73
    %v75 = vrot.slane %v70, %v74
    %v77 = vmul.f32 %v68, %v75
    %v78 = vmul.f32 %v69, %v75
    %v79 = vld [vmem:[%s2] sm:$0x1]
    %v81 = vlaneseq
    %v82 = vshrl.u32 %v81, 7
    %v83 = vsub.s32 0, %v82
    %v84 = vrot.slane %v79, %v83
    %v86 = vadd.f32 %v77, %v84
    %v87 = vadd.f32 %v78, %v84
    %88 = vst [vmem:[#allocation5] sm:$0xff] %v86
    %89 = vst [vmem:[#allocation5 + $0x8] sm:$0xff] %v87
    // Predicated region
    $region18: #{tpu_custom_call.1} parent=1 // pred_check
      _
    $region19: #{tpu_custom_call.1} parent=1 // pred_check_branch
      %91 = sbr.rel (0) target = $region21
    $region20: #{tpu_custom_call.1} parent=1 // pred_region
      %s93 = ssub.s32 256, 256
      %94 = vsyncadd [#allocation4], %s93
      %s95 = sshll.u32 [#allocation5], 4
      %s96 = int_to_ptr.vmem [resolvable:$true] %s95
      %101 = dma.vmem_to_hbm [thread:$0]  %s96, 256, %s3, [#allocation4], 128, 128, 8
    $region21: #{tpu_custom_call.1} parent=1 // pred_fallthru
      _
    // Predicated region
    $region22: #{tpu_custom_call.1} parent=1 // pred_check
      _
    $region23: #{tpu_custom_call.1} parent=1 // pred_check_branch
      %103 = sbr.rel (0) target = $region25
    $region24: #{tpu_custom_call.1} parent=1 // pred_region
      %104 = dma.done [#allocation4], 256
    $region25: #{tpu_custom_call.1} parent=1 // pred_fallthru
      _
    %105 = vsyncpa [#allocation3], 1
    %106 = vsyncpa [#allocation4], 1

</llo_original>
